<compile_context>
chip_gen: v7x
topology: tpu7x:2x2x1
jax: 0.10.0
libtpu: 0.0.40
codegen_flags: <defaults>
</compile_context>

<pallas_src>
import functools

import numpy as np
import jax
import jax.numpy as jnp
from jax.experimental import pallas as pl
from jax.experimental.pallas import tpu as pltpu

N_QUBITS = 4
DIM = 1 << N_QUBITS   # 16
N_OUT = 6

# Lane-dense batch tile. Per-generation guidance: v5e/v6e can go to ~16K, keep <=16K on v7x
# (64 MiB physical VMEM). 8192 keeps the live footprint at a few MiB on every generation.
DEFAULT_TILE_B = 8192
_VMEM_LIMIT_BYTES = 32 * 1024 * 1024   # explicit scoped-VMEM budget (v5e default is only 16 MiB)


# ----------------------------- Pallas kernel ---------------------------------
def qnn_kernel(xt_ref, qw0_ref, c_ref, m_ref, b_ref, out_ref):
    xt = xt_ref[...]                               # [4, TB]  (features on sublanes, batch on lanes)

    # RY(inputs) followed by RY(weights[0]) on the same wire == RY(inputs + weights[0]).
    half = (xt + qw0_ref[...]) * 0.5               # [4, TB]
    c = jnp.cos(half)
    s = jnp.sin(half)

    # Product state via hierarchical pairwise Kronecker build (wire 0 = MSB):
    #   pa[2*b0+b1] = f0(b0)*f1(b1),  pb[2*b2+b3] = f2(b2)*f3(b3),  f_i(0)=cos, f_i(1)=sin
    pa = jnp.concatenate(
        [c[0:1] * c[1:2], c[0:1] * s[1:2], s[0:1] * c[1:2], s[0:1] * s[1:2]], axis=0)  # [4, TB]
    pb = jnp.concatenate(
        [c[2:3] * c[3:4], c[2:3] * s[3:4], s[2:3] * c[3:4], s[2:3] * s[3:4]], axis=0)  # [4, TB]
    # state[8*b0 + 4*b1 + 2*b2 + b3] = pa[2*b0+b1] * pb[2*b2+b3]
    state = jnp.concatenate([pa[j:j + 1] * pb for j in range(4)], axis=0)              # [16, TB]

    # Folded circuit operator: psi <- (R2 P R1 P) psi, one 16x16 MXU matmul.
    state = jnp.dot(c_ref[...], state, preferred_element_type=jnp.float32)             # [16, TB]

    # |psi|^2, then PauliZ projection fused with Linear(4->6): logits = M @ probs + b.
    probs = state * state                                                               # [16, TB]
    logits = jnp.dot(m_ref[...], probs, preferred_element_type=jnp.float32) + b_ref[...]  # [6, TB]

    # Softmax over the class axis. probs sum to 1 and M, b are small, so the logits are tightly
    # bounded and the usual max-subtraction (XLU max + broadcast + subtract) is unnecessary.
    e = jnp.exp(logits)
    denom = jnp.sum(e, axis=0, keepdims=True)
    r = pl.reciprocal(denom, approx=True)
    r = r * (2.0 - denom * r)                      # one Newton step -> full f32 precision
    out_ref[...] = e * r


# --------------------------- constants (module level) --------------------------
def _cnot_ring_matrix():
    # CNOT(0,1), CNOT(1,2), CNOT(2,3), CNOT(3,0) applied in sequence (basis permutation).
    P = np.zeros((DIM, DIM), np.float32)
    for k in range(DIM):
        b = [(k >> (N_QUBITS - 1 - i)) & 1 for i in range(N_QUBITS)]
        for i in range(N_QUBITS - 1):
            b[i + 1] ^= b[i]
        b[0] ^= b[N_QUBITS - 1]
        j = sum(b[i] << (N_QUBITS - 1 - i) for i in range(N_QUBITS))
        P[j, k] = 1.0
    return P


def _pauli_z_table():
    Z = np.zeros((DIM, N_QUBITS), np.float32)
    for k in range(DIM):
        for i in range(N_QUBITS):
            Z[k, i] = 1.0 - 2.0 * ((k >> (N_QUBITS - 1 - i)) & 1)
    return Z


_P_RING = _cnot_ring_matrix()        # [16, 16] numpy, built once at import
_ZT = _pauli_z_table().T             # [4, 16]  numpy, built once at import


def _ry2(theta):
    c = jnp.cos(theta * 0.5)
    s = jnp.sin(theta * 0.5)
    return jnp.stack([jnp.stack([c, -s]), jnp.stack([s, c])])


def _kron_ry_layer(angles):
    # Wire 0 is the left-most (most significant) factor.
    m = jnp.ones((1, 1), jnp.float32)
    for i in range(N_QUBITS):
        m = jnp.kron(m, _ry2(angles[i]))
    return m  # [16, 16]


def _fold_constants(quantum_weights, lin_w, lin_b):
    """Weight-dependent fold (tiny, runs under jit)."""
    P = jnp.asarray(_P_RING)
    R1 = _kron_ry_layer(quantum_weights[1])
    R2 = _kron_ry_layer(quantum_weights[2])
    C = R2 @ P @ R1 @ P                                               # [16, 16]
    M = lin_w.astype(jnp.float32) @ jnp.asarray(_ZT)                  # [6, 16]
    qw0 = quantum_weights[0].reshape(N_QUBITS, 1).astype(jnp.float32) # [4, 1]
    bcol = lin_b.reshape(N_OUT, 1).astype(jnp.float32)                # [6, 1]
    return C, M, qw0, bcol


# ------------------------------- tiling helpers --------------------------------
def _round_up(n, m):
    return ((n + m - 1) // m) * m


def _choose_tile_b(batch, max_tile_b=DEFAULT_TILE_B):
    """Largest lane tile <= max_tile_b, keeping >=4 grid steps once the batch is big enough
    (so the 'parallel' axis can shard across v7x's two TensorCores and DMA overlaps compute)."""
    tile = min(max_tile_b, _round_up(batch, 128))
    while tile > 2048 and _round_up(batch, tile) // tile < 4:
        tile = _round_up(tile // 2, 128)
    return max(tile, 128)


# ------------------------------ forward wrappers --------------------------------
@functools.partial(jax.jit, static_argnames=("tile_b",))
def qnn_forward_cm(xt, quantum_weights, lin_w, lin_b, tile_b=None):
    """Transpose-free fast path: xt [4, B] (batch on lanes) -> probs [6, B] (class-major)."""
    B = xt.shape[1]
    if tile_b is None:
        tile_b = _choose_tile_b(B)
    b_pad = _round_up(B, tile_b)

    xt = xt.astype(jnp.float32)
    if b_pad != B:
        xt = jnp.pad(xt, ((0, 0), (0, b_pad - B)))

    C, M, qw0, bcol = _fold_constants(quantum_weights, lin_w, lin_b)

    grid = (b_pad // tile_b,)

    def const_spec(shape):
        return pl.BlockSpec(shape, lambda i: (0, 0))

    out = pl.pallas_call(
        qnn_kernel,
        out_shape=jax.ShapeDtypeStruct((N_OUT, b_pad), jnp.float32),
        grid=grid,
        in_specs=[
            pl.BlockSpec((N_QUBITS, tile_b), lambda i: (0, i)),    # x^T tile
            const_spec((N_QUBITS, 1)),                             # qw0
            const_spec((DIM, DIM)),                                # folded circuit C
            const_spec((N_OUT, DIM)),                              # fused Z + Linear
            const_spec((N_OUT, 1)),                                # bias
        ],
        out_specs=pl.BlockSpec((N_OUT, tile_b), lambda i: (0, i)),
        compiler_params=pltpu.CompilerParams(
            dimension_semantics=("parallel",),                     # v7x: shard batch across TCs
            vmem_limit_bytes=_VMEM_LIMIT_BYTES,
        ),
        cost_estimate=pl.CostEstimate(
            flops=int(b_pad) * (2 * DIM * DIM + 2 * N_OUT * DIM + 8 * DIM),
            transcendentals=int(b_pad) * (2 * N_QUBITS + N_OUT + 1),
            bytes_accessed=int(b_pad) * 4 * (N_QUBITS + N_OUT) + 2048,
        ),
    )(xt, qw0, C, M, bcol)

    return out[:, :B]


def qnn_forward(x, quantum_weights, lin_w, lin_b, tile_b=None):
    """PyTorch-compatible convention: x [B, 4] -> softmax probs [B, 6].

    For peak throughput call qnn_forward_cm directly with feature-major input [4, B] and consume
    the class-major [6, B] output; that removes the two full HBM transpose passes done here.
    """
    out_cm = qnn_forward_cm(jnp.transpose(x), quantum_weights, lin_w, lin_b, tile_b=tile_b)
    return jnp.transpose(out_cm)


# ------------------------------ numpy reference --------------------------------
def _ref_forward(x, qw, lin_w, lin_b):
    def ry(psi, wire, theta):
        c, s = np.cos(theta / 2), np.sin(theta / 2)
        psi = np.moveaxis(psi, wire, 0)
        a0, a1 = psi[0].copy(), psi[1].copy()
        new = np.stack([c * a0 - s * a1, s * a0 + c * a1], axis=0)
        return np.moveaxis(new, 0, wire)

    def cnot(psi, cw, tw):
        psi = np.moveaxis(psi, [cw, tw], [0, 1])
        new = psi.copy()
        new[1, 0], new[1, 1] = psi[1, 1], psi[1, 0]
        return np.moveaxis(new, [0, 1], [cw, tw])

    q = np.zeros((x.shape[0], N_QUBITS), np.float32)
    for b in range(x.shape[0]):
        psi = np.zeros(DIM, np.float64)
        psi[0] = 1.0
        psi = psi.reshape([2] * N_QUBITS)
        for i in range(N_QUBITS):
            psi = ry(psi, i, x[b, i])
        for layer in range(3):
            for i in range(N_QUBITS):
                psi = ry(psi, i, qw[layer, i])
            if layer < 2:
                for i in range(N_QUBITS - 1):
                    psi = cnot(psi, i, i + 1)
                psi = cnot(psi, N_QUBITS - 1, 0)
        p = psi ** 2
        for i in range(N_QUBITS):
            q[b, i] = 1.0 - 2.0 * np.moveaxis(p, i, 0)[1].sum()
    logits = q @ lin_w.T + lin_b
    e = np.exp(logits - logits.max(axis=1, keepdims=True))
    return e / e.sum(axis=1, keepdims=True)


# ----------------------------------- main --------------------------------------
if __name__ == "__main__":
    key = jax.random.PRNGKey(0)
    k_x, k_qw, k_w, k_b = jax.random.split(key, 4)

    B = 2
    x = jax.random.normal(k_x, (B, N_QUBITS), jnp.float32)
    quantum_weights = jax.random.normal(k_qw, (3, N_QUBITS), jnp.float32)
    bound = 1.0 / np.sqrt(N_QUBITS)
    lin_w = jax.random.uniform(k_w, (N_OUT, N_QUBITS), jnp.float32, -bound, bound)
    lin_b = jax.random.uniform(k_b, (N_OUT,), jnp.float32, -bound, bound)

    out = qnn_forward(x, quantum_weights, lin_w, lin_b)
    out = jax.block_until_ready(out)

    ref = _ref_forward(np.asarray(x), np.asarray(quantum_weights),
                       np.asarray(lin_w), np.asarray(lin_b))
    np.testing.assert_allclose(np.asarray(out), ref, rtol=1e-4, atol=1e-4)
    assert out.shape == (B, N_OUT)

    # Transpose-free fast path must agree with the compatibility wrapper.
    out_cm = jax.block_until_ready(
        qnn_forward_cm(jnp.transpose(x), quantum_weights, lin_w, lin_b))
    np.testing.assert_allclose(np.asarray(out_cm).T, ref, rtol=1e-4, atol=1e-4)

    print("KERNEL_OK")
</pallas_src>

<mosaic_0001>
module attributes {stable_mosaic.version = 11 : i64} {
  func.func @qnn_kernel(%arg0: i32, %arg1: memref<4x128xf32, #tpu.memory_space<vmem>>, %arg2: memref<4x1xf32, #tpu.memory_space<vmem>>, %arg3: memref<16x16xf32, #tpu.memory_space<vmem>>, %arg4: memref<6x16xf32, #tpu.memory_space<vmem>>, %arg5: memref<6x1xf32, #tpu.memory_space<vmem>>, %arg6: memref<6x128xf32, #tpu.memory_space<vmem>>) attributes {dimension_semantics = [#tpu.dimension_semantics<parallel>], iteration_bounds = array<i64: 1>, scalar_prefetch = 0 : i64, scratch_operands = 0 : i64, tpu.core_type = #tpu.core_type<tc>, window_params = [{transform_indices = @transform_0, window_bounds = array<i64: 4, 128>}, {pipeline_mode = #tpu.pipeline_mode<synchronous>, transform_indices = @transform_1, window_bounds = array<i64: 4, 1>}, {pipeline_mode = #tpu.pipeline_mode<synchronous>, transform_indices = @transform_2, window_bounds = array<i64: 16, 16>}, {pipeline_mode = #tpu.pipeline_mode<synchronous>, transform_indices = @transform_3, window_bounds = array<i64: 6, 16>}, {pipeline_mode = #tpu.pipeline_mode<synchronous>, transform_indices = @transform_4, window_bounds = array<i64: 6, 1>}, {transform_indices = @transform_5, window_bounds = array<i64: 6, 128>}]} {
    %c0 = arith.constant 0 : index
    %c0_0 = arith.constant 0 : index
    %0 = vector.load %arg1[%c0, %c0_0] : memref<4x128xf32, #tpu.memory_space<vmem>>, vector<4x128xf32>
    %c0_1 = arith.constant 0 : index
    %c0_2 = arith.constant 0 : index
    %1 = vector.load %arg2[%c0_1, %c0_2] : memref<4x1xf32, #tpu.memory_space<vmem>>, vector<4x1xf32>
    %2 = vector.broadcast %1 : vector<4x1xf32> to vector<4x128xf32>
    %3 = arith.addf %0, %2 : vector<4x128xf32>
    %cst = arith.constant 5.000000e-01 : f32
    %4 = vector.broadcast %cst : f32 to vector<4x128xf32>
    %5 = arith.mulf %3, %4 : vector<4x128xf32>
    %6 = math.cos %5 : vector<4x128xf32>
    %7 = math.sin %5 : vector<4x128xf32>
    %8 = vector.extract_strided_slice %6 {offsets = [0, 0], sizes = [1, 128], strides = [1, 1]} : vector<4x128xf32> to vector<1x128xf32>
    %9 = vector.extract_strided_slice %6 {offsets = [1, 0], sizes = [1, 128], strides = [1, 1]} : vector<4x128xf32> to vector<1x128xf32>
    %10 = arith.mulf %8, %9 : vector<1x128xf32>
    %11 = vector.extract_strided_slice %6 {offsets = [0, 0], sizes = [1, 128], strides = [1, 1]} : vector<4x128xf32> to vector<1x128xf32>
    %12 = vector.extract_strided_slice %7 {offsets = [1, 0], sizes = [1, 128], strides = [1, 1]} : vector<4x128xf32> to vector<1x128xf32>
    %13 = arith.mulf %11, %12 : vector<1x128xf32>
    %14 = vector.extract_strided_slice %7 {offsets = [0, 0], sizes = [1, 128], strides = [1, 1]} : vector<4x128xf32> to vector<1x128xf32>
    %15 = vector.extract_strided_slice %6 {offsets = [1, 0], sizes = [1, 128], strides = [1, 1]} : vector<4x128xf32> to vector<1x128xf32>
    %16 = arith.mulf %14, %15 : vector<1x128xf32>
    %17 = vector.extract_strided_slice %7 {offsets = [0, 0], sizes = [1, 128], strides = [1, 1]} : vector<4x128xf32> to vector<1x128xf32>
    %18 = vector.extract_strided_slice %7 {offsets = [1, 0], sizes = [1, 128], strides = [1, 1]} : vector<4x128xf32> to vector<1x128xf32>
    %19 = arith.mulf %17, %18 : vector<1x128xf32>
    %20 = tpu.concatenate %10, %13, %16, %19 in 0 : vector<1x128xf32>, vector<1x128xf32>, vector<1x128xf32>, vector<1x128xf32> -> vector<4x128xf32>
    %21 = vector.extract_strided_slice %6 {offsets = [2, 0], sizes = [1, 128], strides = [1, 1]} : vector<4x128xf32> to vector<1x128xf32>
    %22 = vector.extract_strided_slice %6 {offsets = [3, 0], sizes = [1, 128], strides = [1, 1]} : vector<4x128xf32> to vector<1x128xf32>
    %23 = arith.mulf %21, %22 : vector<1x128xf32>
    %24 = vector.extract_strided_slice %6 {offsets = [2, 0], sizes = [1, 128], strides = [1, 1]} : vector<4x128xf32> to vector<1x128xf32>
    %25 = vector.extract_strided_slice %7 {offsets = [3, 0], sizes = [1, 128], strides = [1, 1]} : vector<4x128xf32> to vector<1x128xf32>
    %26 = arith.mulf %24, %25 : vector<1x128xf32>
    %27 = vector.extract_strided_slice %7 {offsets = [2, 0], sizes = [1, 128], strides = [1, 1]} : vector<4x128xf32> to vector<1x128xf32>
    %28 = vector.extract_strided_slice %6 {offsets = [3, 0], sizes = [1, 128], strides = [1, 1]} : vector<4x128xf32> to vector<1x128xf32>
    %29 = arith.mulf %27, %28 : vector<1x128xf32>
    %30 = vector.extract_strided_slice %7 {offsets = [2, 0], sizes = [1, 128], strides = [1, 1]} : vector<4x128xf32> to vector<1x128xf32>
    %31 = vector.extract_strided_slice %7 {offsets = [3, 0], sizes = [1, 128], strides = [1, 1]} : vector<4x128xf32> to vector<1x128xf32>
    %32 = arith.mulf %30, %31 : vector<1x128xf32>
    %33 = tpu.concatenate %23, %26, %29, %32 in 0 : vector<1x128xf32>, vector<1x128xf32>, vector<1x128xf32>, vector<1x128xf32> -> vector<4x128xf32>
    %34 = vector.extract_strided_slice %20 {offsets = [0, 0], sizes = [1, 128], strides = [1, 1]} : vector<4x128xf32> to vector<1x128xf32>
    %35 = vector.broadcast %34 : vector<1x128xf32> to vector<4x128xf32>
    %36 = arith.mulf %35, %33 : vector<4x128xf32>
    %37 = vector.extract_strided_slice %20 {offsets = [1, 0], sizes = [1, 128], strides = [1, 1]} : vector<4x128xf32> to vector<1x128xf32>
    %38 = vector.broadcast %37 : vector<1x128xf32> to vector<4x128xf32>
    %39 = arith.mulf %38, %33 : vector<4x128xf32>
    %40 = vector.extract_strided_slice %20 {offsets = [2, 0], sizes = [1, 128], strides = [1, 1]} : vector<4x128xf32> to vector<1x128xf32>
    %41 = vector.broadcast %40 : vector<1x128xf32> to vector<4x128xf32>
    %42 = arith.mulf %41, %33 : vector<4x128xf32>
    %43 = vector.extract_strided_slice %20 {offsets = [3, 0], sizes = [1, 128], strides = [1, 1]} : vector<4x128xf32> to vector<1x128xf32>
    %44 = vector.broadcast %43 : vector<1x128xf32> to vector<4x128xf32>
    %45 = arith.mulf %44, %33 : vector<4x128xf32>
    %46 = tpu.concatenate %36, %39, %42, %45 in 0 : vector<4x128xf32>, vector<4x128xf32>, vector<4x128xf32>, vector<4x128xf32> -> vector<16x128xf32>
    %c0_3 = arith.constant 0 : index
    %c0_4 = arith.constant 0 : index
    %47 = vector.load %arg3[%c0_3, %c0_4] : memref<16x16xf32, #tpu.memory_space<vmem>>, vector<16x16xf32>
    %cst_5 = arith.constant dense<0.000000e+00> : vector<16x128xf32>
    %48 = tpu.matmul %47, %46, %cst_5 {dimension_numbers = #tpu.dot_dimension_numbers<[1], [0], [0], [1], [0, 0, 1, 1], [], []>} : vector<16x16xf32>, vector<16x128xf32>, vector<16x128xf32> -> vector<16x128xf32>
    %49 = arith.mulf %48, %48 : vector<16x128xf32>
    %c0_6 = arith.constant 0 : index
    %c0_7 = arith.constant 0 : index
    %50 = vector.load %arg4[%c0_6, %c0_7] : memref<6x16xf32, #tpu.memory_space<vmem>>, vector<6x16xf32>
    %cst_8 = arith.constant dense<0.000000e+00> : vector<6x128xf32>
    %51 = tpu.matmul %50, %49, %cst_8 {dimension_numbers = #tpu.dot_dimension_numbers<[1], [0], [0], [1], [0, 0, 1, 1], [], []>} : vector<6x16xf32>, vector<16x128xf32>, vector<6x128xf32> -> vector<6x128xf32>
    %c0_9 = arith.constant 0 : index
    %c0_10 = arith.constant 0 : index
    %52 = vector.load %arg5[%c0_9, %c0_10] : memref<6x1xf32, #tpu.memory_space<vmem>>, vector<6x1xf32>
    %53 = vector.broadcast %52 : vector<6x1xf32> to vector<6x128xf32>
    %54 = arith.addf %51, %53 : vector<6x128xf32>
    %55 = math.exp %54 : vector<6x128xf32>
    %cst_11 = arith.constant dense<0.000000e+00> : vector<128xf32>
    %56 = vector.multi_reduction <add>, %55, %cst_11 [0] : vector<6x128xf32> to vector<128xf32>
    %57 = vector.shape_cast %56 : vector<128xf32> to vector<1x128xf32>
    %58 = tpu.reciprocal %57 {approx = true} : vector<1x128xf32> -> vector<1x128xf32>
    %59 = arith.mulf %57, %58 : vector<1x128xf32>
    %cst_12 = arith.constant 2.000000e+00 : f32
    %60 = vector.broadcast %cst_12 : f32 to vector<1x128xf32>
    %61 = arith.subf %60, %59 : vector<1x128xf32>
    %62 = arith.mulf %58, %61 : vector<1x128xf32>
    %63 = vector.broadcast %62 : vector<1x128xf32> to vector<6x128xf32>
    %64 = arith.mulf %55, %63 : vector<6x128xf32>
    %c0_13 = arith.constant 0 : index
    %c0_14 = arith.constant 0 : index
    %65 = vector.load %arg6[%c0_13, %c0_14] : memref<6x128xf32, #tpu.memory_space<vmem>>, vector<6x128xf32>
    tpu.vector_store %arg6[%c0_13, %c0_14], %64 {strides = array<i32>} : memref<6x128xf32, #tpu.memory_space<vmem>>, vector<6x128xf32>,
    return
  }
  func.func @transform_0(%arg0: i32) -> (i32, i32) {
    %c0_i32 = arith.constant 0 : i32
    %c0_i32_0 = arith.constant 0 : i32
    return %c0_i32, %arg0 : i32, i32
  }
  func.func @transform_1(%arg0: i32) -> (i32, i32) {
    %c0_i32 = arith.constant 0 : i32
    %c0_i32_0 = arith.constant 0 : i32
    %c0_i32_1 = arith.constant 0 : i32
    return %c0_i32, %c0_i32_0 : i32, i32
  }
  func.func @transform_2(%arg0: i32) -> (i32, i32) {
    %c0_i32 = arith.constant 0 : i32
    %c0_i32_0 = arith.constant 0 : i32
    %c0_i32_1 = arith.constant 0 : i32
    return %c0_i32, %c0_i32_0 : i32, i32
  }
  func.func @transform_3(%arg0: i32) -> (i32, i32) {
    %c0_i32 = arith.constant 0 : i32
    %c0_i32_0 = arith.constant 0 : i32
    %c0_i32_1 = arith.constant 0 : i32
    return %c0_i32, %c0_i32_0 : i32, i32
  }
  func.func @transform_4(%arg0: i32) -> (i32, i32) {
    %c0_i32 = arith.constant 0 : i32
    %c0_i32_0 = arith.constant 0 : i32
    %c0_i32_1 = arith.constant 0 : i32
    return %c0_i32, %c0_i32_0 : i32, i32
  }
  func.func @transform_5(%arg0: i32) -> (i32, i32) {
    %c0_i32 = arith.constant 0 : i32
    %c0_i32_0 = arith.constant 0 : i32
    return %c0_i32, %arg0 : i32, i32
  }
}

</mosaic_0001>

<llo_original>
// kernel: qnn_forward_cm.1
$region0: #{qnn_forward_cm.1}
  #allocation0 [shape = 'u32[]', space=smem, size = 0x4, offset = 0x4, fixed_abs, tag = 'smem constant byte address 0x4 - core index']
  #allocation1 [shape = 'u32[144,128]{1,0:T(1,128)}', space=vmem, size = 0x12000, scoped, tag = 'internal scratch']
  %s0 = inlined_call_operand.vmem [shape: f32[4,128], index: 0, kind: input, shape index: {}]
  %s1 = inlined_call_operand.vmem [shape: f32[4,1], index: 1, kind: input, shape index: {}]
  %s2 = inlined_call_operand.vmem [shape: f32[16,16], index: 2, kind: input, shape index: {}]
  %s3 = inlined_call_operand.vmem [shape: f32[6,16], index: 3, kind: input, shape index: {}]
  %s4 = inlined_call_operand.vmem [shape: f32[6,1], index: 4, kind: input, shape index: {}]
  %s5 = inlined_call_operand.vmem [shape: f32[6,128], index: 5, kind: output, shape index: {}]
  %s6 = sld [smem:[#allocation0]]
  $region30: #{qnn_forward_cm.1} parent=0
    _
  %s8 = ssub.s32 1, %s6
  %s9 = scalar_select 0, %s8, %s6
  // Predicated region
  $region2: #{qnn_forward_cm.1} parent=0 // pred_check
    _
  $region3: #{qnn_forward_cm.1} parent=0 // pred_check_branch
    %11 = sbr.rel (0) target = $region5
  $region4: #{qnn_forward_cm.1} parent=0 // pred_region
    _
  $region5: #{qnn_forward_cm.1} parent=0 // pred_fallthru
    _
  // Predicated region
  $region6: #{qnn_forward_cm.1} parent=0 // pred_check
    _
  $region7: #{qnn_forward_cm.1} parent=0 // pred_check_branch
    %13 = sbr.rel (0) target = $region9
  $region8: #{qnn_forward_cm.1} parent=0 // pred_region
    _
  $region9: #{qnn_forward_cm.1} parent=0 // pred_fallthru
    _
  // Predicated region
  $region10: #{qnn_forward_cm.1} parent=0 // pred_check
    _
  $region11: #{qnn_forward_cm.1} parent=0 // pred_check_branch
    %15 = sbr.rel (0) target = $region13
  $region12: #{qnn_forward_cm.1} parent=0 // pred_region
    _
  $region13: #{qnn_forward_cm.1} parent=0 // pred_fallthru
    _
  // Predicated region
  $region14: #{qnn_forward_cm.1} parent=0 // pred_check
    _
  $region15: #{qnn_forward_cm.1} parent=0 // pred_check_branch
    %17 = sbr.rel (0) target = $region17
  $region16: #{qnn_forward_cm.1} parent=0 // pred_region
    _
  $region17: #{qnn_forward_cm.1} parent=0 // pred_fallthru
    _
  // Predicated region
  $region18: #{qnn_forward_cm.1} parent=0 // pred_check
    _
  $region19: #{qnn_forward_cm.1} parent=0 // pred_check_branch
    %19 = sbr.rel (0) target = $region21
  $region20: #{qnn_forward_cm.1} parent=0 // pred_region
    _
  $region21: #{qnn_forward_cm.1} parent=0 // pred_fallthru
    _
  %v20 = vld [vmem:[%s0] sm:$0xf]
  %v21 = vld [vmem:[%s1] sm:$0xf]
  %23 = vset.pattern.permute.xlu0 0
  %24 = vperm.xlu0 %23, %v21
  %v25 = vpop.permute.xlu0 %24
  %v27 = vadd.f32 %v20, %v25
  %v28 = vmul.f32 %v27, 0.5
  %v29 = vand.u32 2147483647, %v28
  %vm30 = vcmp.le.f32.partialorder %v29, 0.7853982
  %vm31 = vcmp.lt.s32.totalorder %v28, 0
  %v32 = vand.u32 %v28, 2139095040
  %v33 = vshrl.u32 %v32, 23
  %v34 = vsub.s32 %v33, 127
  %v35 = vand.u32 2147483647, %v28
  %v36 = vand.u32 %v35, 8388607
  %v37 = vor.u32 %v36, 8388608
  %v38 = vsub.s32 0, %v37
  %v39 = vadd.s32 %v34, 1
  %vm40 = vcmp.gt.s32.totalorder %v39, 0
  %v41 = vsel %vm40, %v39, 0
  %v42 = vshrl.u32 %v41, 5
  %v43 = vand.u32 %v41, 31
  %v44 = vsub.s32 32, %v43
  %v45 = vshrl.u32 683565275, %v44
  %v46 = vshll.u32 683565275, %v43
  %v47 = vshrl.u32 2475754826, %v44
  %v48 = vor.u32 %v46, %v47
  %v49 = vshll.u32 2475754826, %v43
  %v50 = vshrl.u32 2131351028, %v44
  %v51 = vor.u32 %v49, %v50
  %v52 = vshll.u32 2131351028, %v43
  %v53 = vshrl.u32 2102212464, %v44
  %v54 = vor.u32 %v52, %v53
  %v55 = vshll.u32 2102212464, %v43
  %v56 = vshrl.u32 920167782, %v44
  %v57 = vor.u32 %v55, %v56
  %v58 = vshll.u32 920167782, %v43
  %v59 = vshrl.u32 1326507024, %v44
  %v60 = vor.u32 %v58, %v59
  %vm61 = vcmp.lt.s32.totalorder %v42, 1
  %vm62 = vcmp.lt.s32.totalorder %v42, 2
  %vm63 = vcmp.lt.s32.totalorder %v42, 3
  %vm64 = vcmp.lt.s32.totalorder %v42, 4
  %v65 = vsel %vm61, %v45, %v48
  %v66 = vsel %vm64, %v54, 2102212464
  %v67 = vsel %vm63, %v51, %v66
  %v68 = vsel %vm62, %v65, %v67
  %v69 = vsel %vm61, %v48, %v51
  %v70 = vsel %vm64, %v57, 920167782
  %v71 = vsel %vm63, %v54, %v70
  %v72 = vsel %vm62, %v69, %v71
  %v73 = vsel %vm61, %v51, %v54
  %v74 = vsel %vm64, %v60, 1326507024
  %v75 = vsel %vm63, %v57, %v74
  %v76 = vsel %vm62, %v73, %v75
  %v77 = vshll.u32 %v37, 8
  %v78 = vmul.u32.u64.compose %v77, %v76
  %v79 = vextract.low.u32 %v78
  %v80 = vextract.high.u32 %v78
  %v81 = vmul.u32.u64.compose %v77, %v72
  %v82 = vextract.low.u32 %v81
  %v83 = vextract.high.u32 %v81
  %v84 = vmul.u32 %v77, %v68
  %v85 = vadd.s32 %v80, %v82
  %vm86 = vc.u32 %v80, %v82
  %v87 = vadd.s32 %v83, 1
  %v88 = vsel %vm86, %v87, %v83
  %v89 = vadd.s32 %v84, %v88
  %v90 = vadd.s32 %v89, 536870912
  %v91 = vshrl.u32 %v90, 30
  %v92 = vshll.u32 %v91, 30
  %v93 = vsub.s32 %v89, %v92
  %vm94 = vcmp.lt.s32.totalorder %v93, 0
  %v95 = vsub.s32 0, %v93
  %v96 = vsel %vm94, %v95, %v93
  %v97 = vclz %v96
  %v98 = vsub.s32 %v97, 2
  %vm99 = vcmp.gt.s32.totalorder 0, %v98
  %v100 = vsel %vm99, 0, %v98
  %v101 = vsub.s32 32, %v100
  %v102 = vshll.u32 %v93, %v100
  %v103 = vshrl.u32 %v85, %v101
  %v104 = vor.u32 %v102, %v103
  %v105 = vsub.s32 4294967266, %v100
  %v106 = vadd.s32 %v105, 127
  %v107 = vshll.u32 %v106, 23
  %v108 = vor.u32 4788187, %v107
  %v109 = vand.u32 2147483647, %v108
  %v111 = vcvt.s32.f32 %v104
  %v112 = vmul.f32 %v111, %v109
  %v113 = vxor.u32 %v112, 2147483648
  %v114 = vsel %vm31, %v113, %v112
  %v115 = vsub.s32 4, %v91
  %v116 = vsel %vm31, %v115, %v91
  %v117 = vsel %vm30, %v28, %v114
  %v118 = vsel %vm30, 0, %v116
  %v119 = vcosq.f32.pop %v117
  %v120 = vsinq.f32.pop %v117
  %vm121 = vweird.f32 %v28
  %v122 = vand.u32 %v118, 3
  %vm123 = vcmp.lt.s32.totalorder %v122, 2
  %vm124 = vcmp.eq.s32.totalorder %v122, 0
  %v125 = vxor.u32 %v120, 2147483648
  %v126 = vsel %vm124, %v119, %v125
  %vm127 = vcmp.eq.s32.totalorder %v122, 2
  %v128 = vxor.u32 %v119, 2147483648
  %v129 = vsel %vm127, %v128, %v120
  %v130 = vsel %vm123, %v126, %v129
  %v131 = vsel %vm121, nan, %v130
  %v132 = vand.u32 2147483647, %v28
  %vm133 = vcmp.le.f32.partialorder %v132, 0.7853982
  %vm134 = vcmp.lt.s32.totalorder %v28, 0
  %v135 = vand.u32 %v28, 2139095040
  %v136 = vshrl.u32 %v135, 23
  %v137 = vsub.s32 %v136, 127
  %v138 = vand.u32 2147483647, %v28
  %v139 = vand.u32 %v138, 8388607
  %v140 = vor.u32 %v139, 8388608
  %v141 = vsub.s32 0, %v140
  %v142 = vadd.s32 %v137, 1
  %vm143 = vcmp.gt.s32.totalorder %v142, 0
  %v144 = vsel %vm143, %v142, 0
  %v145 = vshrl.u32 %v144, 5
  %v146 = vand.u32 %v144, 31
  %v147 = vsub.s32 32, %v146
  %v148 = vshrl.u32 683565275, %v147
  %v149 = vshll.u32 683565275, %v146
  %v150 = vshrl.u32 2475754826, %v147
  %v151 = vor.u32 %v149, %v150
  %v152 = vshll.u32 2475754826, %v146
  %v153 = vshrl.u32 2131351028, %v147
  %v154 = vor.u32 %v152, %v153
  %v155 = vshll.u32 2131351028, %v146
  %v156 = vshrl.u32 2102212464, %v147
  %v157 = vor.u32 %v155, %v156
  %v158 = vshll.u32 2102212464, %v146
  %v159 = vshrl.u32 920167782, %v147
  %v160 = vor.u32 %v158, %v159
  %v161 = vshll.u32 920167782, %v146
  %v162 = vshrl.u32 1326507024, %v147
  %v163 = vor.u32 %v161, %v162
  %vm164 = vcmp.lt.s32.totalorder %v145, 1
  %vm165 = vcmp.lt.s32.totalorder %v145, 2
  %vm166 = vcmp.lt.s32.totalorder %v145, 3
  %vm167 = vcmp.lt.s32.totalorder %v145, 4
  %v168 = vsel %vm164, %v148, %v151
  %v169 = vsel %vm167, %v157, 2102212464
  %v170 = vsel %vm166, %v154, %v169
  %v171 = vsel %vm165, %v168, %v170
  %v172 = vsel %vm164, %v151, %v154
  %v173 = vsel %vm167, %v160, 920167782
  %v174 = vsel %vm166, %v157, %v173
  %v175 = vsel %vm165, %v172, %v174
  %v176 = vsel %vm164, %v154, %v157
  %v177 = vsel %vm167, %v163, 1326507024
  %v178 = vsel %vm166, %v160, %v177
  %v179 = vsel %vm165, %v176, %v178
  %v180 = vshll.u32 %v140, 8
  %v181 = vmul.u32.u64.compose %v180, %v179
  %v182 = vextract.low.u32 %v181
  %v183 = vextract.high.u32 %v181
  %v184 = vmul.u32.u64.compose %v180, %v175
  %v185 = vextract.low.u32 %v184
  %v186 = vextract.high.u32 %v184
  %v187 = vmul.u32 %v180, %v171
  %v188 = vadd.s32 %v183, %v185
  %vm189 = vc.u32 %v183, %v185
  %v190 = vadd.s32 %v186, 1
  %v191 = vsel %vm189, %v190, %v186
  %v192 = vadd.s32 %v187, %v191
  %v193 = vadd.s32 %v192, 536870912
  %v194 = vshrl.u32 %v193, 30
  %v195 = vshll.u32 %v194, 30
  %v196 = vsub.s32 %v192, %v195
  %vm197 = vcmp.lt.s32.totalorder %v196, 0
  %v198 = vsub.s32 0, %v196
  %v199 = vsel %vm197, %v198, %v196
  %v200 = vclz %v199
  %v201 = vsub.s32 %v200, 2
  %vm202 = vcmp.gt.s32.totalorder 0, %v201
  %v203 = vsel %vm202, 0, %v201
  %v204 = vsub.s32 32, %v203
  %v205 = vshll.u32 %v196, %v203
  %v206 = vshrl.u32 %v188, %v204
  %v207 = vor.u32 %v205, %v206
  %v208 = vsub.s32 4294967266, %v203
  %v209 = vadd.s32 %v208, 127
  %v210 = vshll.u32 %v209, 23
  %v211 = vor.u32 4788187, %v210
  %v212 = vand.u32 2147483647, %v211
  %v214 = vcvt.s32.f32 %v207
  %v215 = vmul.f32 %v214, %v212
  %v216 = vxor.u32 %v215, 2147483648
  %v217 = vsel %vm134, %v216, %v215
  %v218 = vsub.s32 4, %v194
  %v219 = vsel %vm134, %v218, %v194
  %v220 = vsel %vm133, %v28, %v217
  %v221 = vsel %vm133, 0, %v219
  %v222 = vcosq.f32.pop %v220
  %v223 = vsinq.f32.pop %v220
  %vm224 = vweird.f32 %v28
  %v225 = vadd.s32 %v221, 3
  %v226 = vand.u32 %v225, 3
  %vm227 = vcmp.lt.s32.totalorder %v226, 2
  %vm228 = vcmp.eq.s32.totalorder %v226, 0
  %v229 = vxor.u32 %v223, 2147483648
  %v230 = vsel %vm228, %v222, %v229
  %vm231 = vcmp.eq.s32.totalorder %v226, 2
  %v232 = vxor.u32 %v222, 2147483648
  %v233 = vsel %vm231, %v232, %v223
  %v234 = vsel %vm227, %v230, %v233
  %v235 = vsel %vm224, nan, %v234
  %v237 = vrot.slane %v131, 1
  %v239 = vmul.f32 %v131, %v237
  %v241 = vrot.slane %v235, 1
  %v243 = vmul.f32 %v131, %v241
  %v244 = vmul.f32 %v235, %v237
  %v245 = vmul.f32 %v235, %v241
  %v247 = vrot.slane %v243, 7
  %v250 = vrot.slane %v244, 6
  %v253 = vrot.slane %v245, 5
  %vm255 = vcmask 1040384
  %v256 = vsel %vm255, %v239, %v247
  %vm257 = vcmask 1041408
  %v258 = vsel %vm257, %v256, %v250
  %vm259 = vcmask 1042432
  %v260 = vsel %vm259, %v258, %v253
  %v262 = vrot.slane %v239, 2
  %v264 = vrot.slane %v243, 1
  %v266 = vrot.slane %v245, 7
  %v268 = vsel %vm255, %v262, %v264
  %v269 = vsel %vm257, %v268, %v244
  %v270 = vsel %vm259, %v269, %v266
  %v271 = vlaneseq
  %v272 = vshrl.u32 %v271, 7
  %v273 = vsub.s32 0, %v272
  %v274 = vrot.slane %v260, %v273
  %v275 = vmul.f32 %v274, %v270
  %v276 = vlaneseq
  %v277 = vshrl.u32 %v276, 7
  %v278 = vsub.s32 1, %v277
  %v279 = vrot.slane %v260, %v278
  %v280 = vmul.f32 %v279, %v270
  %v281 = vlaneseq
  %v282 = vshrl.u32 %v281, 7
  %v283 = vsub.s32 2, %v282
  %v284 = vrot.slane %v260, %v283
  %v285 = vmul.f32 %v284, %v270
  %v286 = vlaneseq
  %v287 = vshrl.u32 %v286, 7
  %v288 = vsub.s32 3, %v287
  %v289 = vrot.slane %v260, %v288
  %v290 = vmul.f32 %v289, %v270
  %v292 = vrot.slane %v280, 4
  %v295 = vrot.slane %v290, 4
  %vm297 = vcmask 1043456
  %v298 = vsel %vm297, %v275, %v292
  %v299 = vsel %vm297, %v285, %v295
  %v300 = vld [vmem:[%s2] sm:$0xff]
  %v301 = vld [vmem:[%s2 + $0x8] sm:$0xff]
  %vm302 = vcmask 130048
  %v304 = vsel %vm302, %v300, 0
  %v307 = vsel %vm302, %v301, 0
  %309 = vmatprep.subr.mxu0 0.0
  %310 = vmatpush1.msra.mxu0 %v298
  %311 = vmatprep.subr.mxu0 0.0
  %312 = vmatpush1.msra.mxu0 %v299
  %313 = vmatprep.subr.mxu0 0.0
  %314 = vmatpush1.msra.mxu0 0.0
  %315 = vmatprep.subr.mxu0 0.0
  %316 = vmatpush1.msra.mxu0 0.0
  %317 = vmatprep.subr.mxu0 0.0
  %318 = vmatpush1.msra.mxu0 0.0
  %319 = vmatprep.subr.mxu0 0.0
  %320 = vmatpush1.msra.mxu0 0.0
  %321 = vmatprep.subr.mxu0 0.0
  %322 = vmatpush1.msra.mxu0 0.0
  %323 = vmatprep.subr.mxu0 0.0
  %324 = vmatpush1.msra.mxu0 0.0
  %325 = vmatprep.subr.mxu0 0.0
  %326 = vmatpush1.msra.mxu0 0.0
  %327 = vmatprep.subr.mxu0 0.0
  %328 = vmatpush1.msra.mxu0 0.0
  %329 = vmatprep.subr.mxu0 0.0
  %330 = vmatpush1.msra.mxu0 0.0
  %331 = vmatprep.subr.mxu0 0.0
  %332 = vmatpush1.msra.mxu0 0.0
  %333 = vmatprep.subr.mxu0 0.0
  %334 = vmatpush1.msra.mxu0 0.0
  %335 = vmatprep.subr.mxu0 0.0
  %336 = vmatpush1.msra.mxu0 0.0
  %337 = vmatprep.subr.mxu0 0.0
  %338 = vmatpush1.msra.mxu0 0.0
  %339 = vmatprep.subr.mxu0 0.0
  %340 = vmatpush1.msra.mxu0 0.0
  %341 = vmatprep.subr.mxu0 0.0
  %342 = vmatpush1.msra.mxu0 0.0
  %343 = vmatprep.subr.mxu0 0.0
  %344 = vmatpush1.msra.mxu0 0.0
  %345 = vmatprep.subr.mxu0 0.0
  %346 = vmatpush1.msra.mxu0 0.0
  %347 = vmatprep.subr.mxu0 0.0
  %348 = vmatpush1.msra.mxu0 0.0
  %349 = vmatprep.subr.mxu0 0.0
  %350 = vmatpush1.msra.mxu0 0.0
  %351 = vmatprep.subr.mxu0 0.0
  %352 = vmatpush1.msra.mxu0 0.0
  %353 = vmatprep.subr.mxu0 0.0
  %354 = vmatpush1.msra.mxu0 0.0
  %355 = vmatprep.subr.mxu0 0.0
  %356 = vmatpush1.msra.mxu0 0.0
  %357 = vmatprep.subr.mxu0 0.0
  %358 = vmatpush1.msra.mxu0 0.0
  %359 = vmatprep.subr.mxu0 0.0
  %360 = vmatpush1.msra.mxu0 0.0
  %361 = vmatprep.subr.mxu0 0.0
  %362 = vmatpush1.msra.mxu0 0.0
  %363 = vmatprep.subr.mxu0 0.0
  %364 = vmatpush1.msra.mxu0 0.0
  %365 = vmatprep.subr.mxu0 0.0
  %366 = vmatpush1.msra.mxu0 0.0
  %367 = vmatprep.subr.mxu0 0.0
  %368 = vmatpush1.msra.mxu0 0.0
  %369 = vmatprep.subr.mxu0 0.0
  %370 = vmatpush1.msra.mxu0 0.0
  %371 = vmatprep.subr.mxu0 0.0
  %372 = vmatpush1.msra.mxu0 0.0
  %373 = vmatprep.mubr.f32.mxu0 0.0
  %374 = vmatmul.mubr.f32.gmra.mrb[0].mxu0 %v304
  %v375 = vpop.f32.mrb[0].mxu0
  %v376 = vadd.f32 0.0, %v375
  %v377 = vpop.f32.mrb[0].mxu0
  %378 = vmatprep.mubr.f32.mxu0 0.0
  %379 = vmatmul.mubr.f32.gmra.mrb[0].mxu0 %v307
  %v380 = vpop.f32.mrb[0].mxu0
  %v381 = vadd.f32 0.0, %v380
  %v382 = vpop.f32.mrb[0].mxu0
  %383 = vdwg.mxu0
  %v384 = vmul.f32 %v376, %v376
  %v385 = vmul.f32 %v381, %v381
  %v386 = vld [vmem:[%s3] sm:$0x3f]
  %v387 = vld [vmem:[%s4] sm:$0x3f]
  %389 = vset.pattern.permute.xlu0 0
  %390 = vperm.xlu0 %389, %v387
  %v391 = vpop.permute.xlu0 %390
  %v394 = vsel %vm302, %v386, 0
  %396 = vmatprep.subr.mxu0 0.0
  %397 = vmatpush1.msra.mxu0 %v384
  %398 = vmatprep.subr.mxu0 0.0
  %399 = vmatpush1.msra.mxu0 %v385
  %400 = vmatprep.subr.mxu0 0.0
  %401 = vmatpush1.msra.mxu0 0.0
  %402 = vmatprep.subr.mxu0 0.0
  %403 = vmatpush1.msra.mxu0 0.0
  %404 = vmatprep.subr.mxu0 0.0
  %405 = vmatpush1.msra.mxu0 0.0
  %406 = vmatprep.subr.mxu0 0.0
  %407 = vmatpush1.msra.mxu0 0.0
  %408 = vmatprep.subr.mxu0 0.0
  %409 = vmatpush1.msra.mxu0 0.0
  %410 = vmatprep.subr.mxu0 0.0
  %411 = vmatpush1.msra.mxu0 0.0
  %412 = vmatprep.subr.mxu0 0.0
  %413 = vmatpush1.msra.mxu0 0.0
  %414 = vmatprep.subr.mxu0 0.0
  %415 = vmatpush1.msra.mxu0 0.0
  %416 = vmatprep.subr.mxu0 0.0
  %417 = vmatpush1.msra.mxu0 0.0
  %418 = vmatprep.subr.mxu0 0.0
  %419 = vmatpush1.msra.mxu0 0.0
  %420 = vmatprep.subr.mxu0 0.0
  %421 = vmatpush1.msra.mxu0 0.0
  %422 = vmatprep.subr.mxu0 0.0
  %423 = vmatpush1.msra.mxu0 0.0
  %424 = vmatprep.subr.mxu0 0.0
  %425 = vmatpush1.msra.mxu0 0.0
  %426 = vmatprep.subr.mxu0 0.0
  %427 = vmatpush1.msra.mxu0 0.0
  %428 = vmatprep.subr.mxu0 0.0
  %429 = vmatpush1.msra.mxu0 0.0
  %430 = vmatprep.subr.mxu0 0.0
  %431 = vmatpush1.msra.mxu0 0.0
  %432 = vmatprep.subr.mxu0 0.0
  %433 = vmatpush1.msra.mxu0 0.0
  %434 = vmatprep.subr.mxu0 0.0
  %435 = vmatpush1.msra.mxu0 0.0
  %436 = vmatprep.subr.mxu0 0.0
  %437 = vmatpush1.msra.mxu0 0.0
  %438 = vmatprep.subr.mxu0 0.0
  %439 = vmatpush1.msra.mxu0 0.0
  %440 = vmatprep.subr.mxu0 0.0
  %441 = vmatpush1.msra.mxu0 0.0
  %442 = vmatprep.subr.mxu0 0.0
  %443 = vmatpush1.msra.mxu0 0.0
  %444 = vmatprep.subr.mxu0 0.0
  %445 = vmatpush1.msra.mxu0 0.0
  %446 = vmatprep.subr.mxu0 0.0
  %447 = vmatpush1.msra.mxu0 0.0
  %448 = vmatprep.subr.mxu0 0.0
  %449 = vmatpush1.msra.mxu0 0.0
  %450 = vmatprep.subr.mxu0 0.0
  %451 = vmatpush1.msra.mxu0 0.0
  %452 = vmatprep.subr.mxu0 0.0
  %453 = vmatpush1.msra.mxu0 0.0
  %454 = vmatprep.subr.mxu0 0.0
  %455 = vmatpush1.msra.mxu0 0.0
  %456 = vmatprep.subr.mxu0 0.0
  %457 = vmatpush1.msra.mxu0 0.0
  %458 = vmatprep.subr.mxu0 0.0
  %459 = vmatpush1.msra.mxu0 0.0
  %460 = vmatprep.mubr.f32.mxu0 0.0
  %461 = vmatmul.mubr.f32.gmra.mrb[0].mxu0 %v394
  %v462 = vpop.f32.mrb[0].mxu0
  %v463 = vadd.f32 %v391, %v462
  %v464 = vpop.f32.mrb[0].mxu0
  %465 = vdwg.mxu0
  %v466 = vmul.f32 %v463, 1.442695
  %v467 = vpow.pop %v466
  %vm468 = vcmask 1045504
  %v469 = vsel %vm468, %v467, 0.0
  %v470 = vrot.slane %v469, 4
  %v471 = vadd.f32 %v469, %v470
  %v472 = vrot.slane %v471, 2
  %v473 = vadd.f32 %v471, %v472
  %v474 = vrot.slane %v473, 1
  %v475 = vadd.f32 %v473, %v474
  %v476 = vrcp.pop %v475
  %v477 = vmul.f32 %v475, %v476
  %v478 = vsub.f32 2.0, %v477
  %v479 = vmul.f32 %v476, %v478
  %v480 = vmul.f32 %v467, %v479
  %481 = vst [vmem:[%s5] sm:$0x3f] %v480
  // Predicated region
  $region22: #{qnn_forward_cm.1} parent=0 // pred_check
    _
  $region23: #{qnn_forward_cm.1} parent=0 // pred_check_branch
    %483 = sbr.rel (0) target = $region25
  $region24: #{qnn_forward_cm.1} parent=0 // pred_region
    _
  $region25: #{qnn_forward_cm.1} parent=0 // pred_fallthru
    _
  // Predicated region
  $region26: #{qnn_forward_cm.1} parent=0 // pred_check
    _
  $region27: #{qnn_forward_cm.1} parent=0 // pred_check_branch
    %485 = sbr.rel (0) target = $region29
  $region28: #{qnn_forward_cm.1} parent=0 // pred_region
    _
  $region29: #{qnn_forward_cm.1} parent=0 // pred_fallthru
    _

</llo_original>
